<compile_context>
chip_gen: v5e
topology: v5e:2x2
jax: 0.10.0
libtpu: 0.0.40
codegen_flags: <defaults>
</compile_context>

<pallas_src>
import functools

import jax
import jax.numpy as jnp
from jax.experimental import pallas as pl
from jax.experimental.pallas import tpu as pltpu

LANE = 128      # TPU lane width (fixed on v5e/v6e/v7x)
SUBLANE = 8


def _round_up(x, m):
    return ((x + m - 1) // m) * m


def _forward_kernel(tok_ref, h_ref, w2_ref, b2_ref, out_ref, *, seq_len):
    """One batch tile.

    tok_ref: (TB, Sp) int32   token ids (Sp >= seq_len; pad slots hold id >= V)
    h_ref  : (Vp, Dp) bf16    precomputed sigmoid(emb @ W1.T + b1), zero-padded
    w2_ref : (1, Dp)  f32     classifier weight row, zero-padded lanes
    b2_ref : (1, 1)   f32     SMEM scalar bias
    out_ref: (TB, 128) f32    lane-dense output slab (prob broadcast on lanes)
    """
    tb, s_pad = tok_ref.shape
    v_pad, d_pad = h_ref.shape

    # Per-row token histogram: counts[b, v] = #{s : tok[b, s] == v}.
    # Sequence pad slots carry an id >= Vp -> all-False one-hot row -> they
    # contribute nothing; we still divide by the true seq_len below.
    # TODO(synk): if TB is raised far beyond ~512, chunk this over row blocks
    # with lax.fori_loop(unroll=True) to bound the (TB, Sp, Vp) live range.
    ids = jax.lax.broadcasted_iota(jnp.int32, (tb, s_pad, v_pad), 2)
    onehot = (ids == tok_ref[...][:, :, None]).astype(jnp.float32)
    counts = jnp.sum(onehot, axis=1)                           # (TB, Vp) exact ints

    # pooled[b] = mean_s H[tok[b, s]] = (counts @ H) / S.
    # bf16 MXU operands (counts are exact small integers in bf16), f32 accum.
    pooled = jnp.dot(counts.astype(jnp.bfloat16), h_ref[...],
                     preferred_element_type=jnp.float32) * (1.0 / seq_len)

    # Linear(D, 1) head: VPU multiply + lane reduce + SMEM scalar bias.
    # Padded lanes of w2 (and padded H columns) are zero -> no contribution.
    logits = jnp.sum(pooled * w2_ref[...], axis=-1, keepdims=True) + b2_ref[0, 0]
    probs = jax.nn.sigmoid(logits)                             # (TB, 1) f32

    # Lane-dense store: full unmasked vst; the wrapper reads lane 0.
    out_ref[...] = jnp.broadcast_to(probs, out_ref.shape)


def torch_model_forward(x_tokens, kernel_params, *, batch_tile=None):
    """x_tokens: (B, S) int32 token ids. Returns y_pred of shape (B, 1) f32."""
    B, S = x_tokens.shape
    h = kernel_params["h_table"]
    w2 = kernel_params["w2"]
    b2 = kernel_params["b2"]
    v_pad, d_pad = h.shape

    if batch_tile is None:
        # Amortize the ~0.35 us per-grid-step cost: ~512 batch rows per step,
        # but never more than the (sublane-padded) batch itself, so small
        # batches run as a single grid step (optimal on single-TC v5e/v6e).
        # On v7x (2 TCs), pass batch_tile ~= ceil(B / 2) rounded to 8 so the
        # grid has >= 2 "parallel" steps and both TensorCores get work.
        batch_tile = min(512, _round_up(B, SUBLANE))
    TB = max(SUBLANE, _round_up(batch_tile, SUBLANE))
    Bp = _round_up(B, TB)
    NB = Bp // TB

    # Pad the sequence axis to a sublane multiple with an out-of-vocab id so
    # the in-kernel (TB, Sp, Vp) one-hot reduce stays 8-aligned; padded slots
    # contribute zero to the histogram and we still divide by the true S.
    Sp = _round_up(S, SUBLANE)
    tok = x_tokens.astype(jnp.int32)
    if Bp != B or Sp != S:
        # Padded batch rows compute valid-but-discarded outputs.
        tok = jnp.pad(tok, ((0, Bp - B), (0, Sp - S)), constant_values=v_pad)

    # Explicit scoped-VMEM budget: double-buffered weights + tile I/O plus the
    # in-kernel intermediates, with slack (defaults are 16 MiB v5e / 32 MiB
    # v6e+v7x; v7x physical VMEM is 64 MiB).
    weight_bytes = h.size * h.dtype.itemsize + w2.size * w2.dtype.itemsize
    tile_io_bytes = TB * Sp * 4 + TB * LANE * 4
    interm_bytes = TB * Sp * v_pad * 8 + 3 * TB * d_pad * 4
    vmem_limit = int(min(64 << 20,
                         max(2 << 20,
                             2 * (weight_bytes + tile_io_bytes)
                             + interm_bytes + (1 << 20))))

    kernel = functools.partial(_forward_kernel, seq_len=S)
    out = pl.pallas_call(
        kernel,
        out_shape=jax.ShapeDtypeStruct((Bp, LANE), jnp.float32),
        grid=(NB,),
        in_specs=[
            pl.BlockSpec((TB, Sp), lambda i: (i, 0)),            # token ids
            # TODO(synk): if the vocab/hidden dims grow to multi-MiB weights,
            # mark these constant-index specs pipeline_mode=pl.Buffered(1) (or
            # load them once into VMEM scratch) to avoid double-buffering them.
            pl.BlockSpec((v_pad, d_pad), lambda i: (0, 0)),      # H table (bf16)
            pl.BlockSpec((1, d_pad), lambda i: (0, 0)),          # w2 row
            pl.BlockSpec(memory_space=pltpu.MemorySpace.SMEM),   # b2 scalar
        ],
        out_specs=pl.BlockSpec((TB, LANE), lambda i: (i, 0)),
        compiler_params=pltpu.CompilerParams(
            # Batch tiles are independent -> shard across TensorCores
            # (megacore / v7x 2 TCs). Weights stay resident per tile.
            dimension_semantics=("parallel",),
            vmem_limit_bytes=vmem_limit,
        ),
    )(tok, h, w2, b2)

    return out[:B, :1]


def init_params(key, vocab_size, input_dim):
    """Logical (unpadded) parameters; linear weights stored as (in, out) == W.T."""
    k1, k2, k3, k4, k5 = jax.random.split(key, 5)
    scale = 0.1
    return {
        "embedding": scale * jax.random.normal(
            k1, (vocab_size + 1, input_dim), jnp.float32),
        "w1_t": scale * jax.random.normal(
            k2, (input_dim, input_dim), jnp.float32),
        "b1": scale * jax.random.normal(k3, (input_dim,), jnp.float32),
        "w2": scale * jax.random.normal(k4, (input_dim,), jnp.float32),
        "b2": scale * jax.random.normal(k5, (1, 1), jnp.float32),
    }


def prepare_kernel_params(params):
    """One-time fusion + padding to TPU-friendly shapes.

    H[v] = sigmoid(emb[v] @ W1.T + b1) folds Embedding, Linear(D, D), the bias
    and the sigmoid into one per-token-id table (Dropout is identity at
    inference). Zero padding is neutral: padded H columns only meet zero w2
    lanes; padded H rows are only reachable by out-of-range / sentinel ids.
    """
    V, D = params["embedding"].shape
    d_pad = _round_up(D, LANE)
    v_pad = _round_up(V, LANE)   # lane dim of the in-kernel one-hot / histogram

    h = jax.nn.sigmoid(params["embedding"] @ params["w1_t"] + params["b1"])
    h = jnp.pad(h, ((0, v_pad - V), (0, d_pad - D)))

    return {
        # bf16 MXU operand (f32 accumulation in-kernel); halves table traffic.
        "h_table": h.astype(jnp.bfloat16),
        "w2": jnp.pad(params["w2"][None, :].astype(jnp.float32),
                      ((0, 0), (0, d_pad - D))),
        "b2": params["b2"].reshape(1, 1).astype(jnp.float32),
    }


def reference_forward(x_tokens, params):
    """Pure-JAX f32 reference matching TorchModel.forward (eval mode)."""
    x = jnp.take(params["embedding"], x_tokens, axis=0)        # (B, S, D)
    h = jax.nn.sigmoid(x @ params["w1_t"] + params["b1"])      # (B, S, D)
    pooled = jnp.mean(h, axis=1)                               # (B, D)
    logits = pooled @ params["w2"][:, None] + params["b2"]     # (B, 1)
    return jax.nn.sigmoid(logits)


if __name__ == "__main__":
    key = jax.random.PRNGKey(0)
    k_params, k_tokens = jax.random.split(key)

    vocab_size = 20        # len(vocab)
    input_dim = 32
    sentence_length = 8
    batch = 2

    params = init_params(k_params, vocab_size, input_dim)
    kernel_params = prepare_kernel_params(params)
    x_tokens = jax.random.randint(
        k_tokens, (batch, sentence_length), 0, vocab_size + 1, dtype=jnp.int32)

    y_pred = torch_model_forward(x_tokens, kernel_params)
    jax.block_until_ready(y_pred)
    assert y_pred.shape == (batch, 1), y_pred.shape

    # bf16 quantization of the fused H table keeps the error well under the
    # tolerance at these scales (one-hot counts are exact in bf16).
    y_ref = reference_forward(x_tokens, params)
    assert jnp.allclose(y_pred, y_ref, atol=2e-3, rtol=2e-3), (y_pred, y_ref)
    print("KERNEL_OK")
</pallas_src>

<mosaic_0001>
module attributes {stable_mosaic.version = 11 : i64} {
  func.func @_forward_kernel(%arg0: i32, %arg1: memref<8x8xi32, #tpu.memory_space<vmem>>, %arg2: memref<128x128xbf16, #tpu.memory_space<vmem>>, %arg3: memref<1x128xf32, #tpu.memory_space<vmem>>, %arg4: memref<1x1xf32, #tpu.memory_space<smem>>, %arg5: memref<8x128xf32, #tpu.memory_space<vmem>>) attributes {dimension_semantics = [#tpu.dimension_semantics<parallel>], iteration_bounds = array<i64: 1>, scalar_prefetch = 0 : i64, scratch_operands = 0 : i64, tpu.core_type = #tpu.core_type<tc>, window_params = [{transform_indices = @transform_0, window_bounds = array<i64: 8, 8>}, {pipeline_mode = #tpu.pipeline_mode<synchronous>, transform_indices = @transform_1, window_bounds = array<i64: 128, 128>}, {pipeline_mode = #tpu.pipeline_mode<synchronous>, transform_indices = @transform_2, window_bounds = array<i64: 1, 128>}, {transform_indices = @transform_3, window_bounds = array<i64: 1, 1>}, {transform_indices = @transform_4, window_bounds = array<i64: 8, 128>}]} {
    %0 = tpu.iota {dimensions = array<i32: 2>} : vector<8x8x128xi32>
    %c0 = arith.constant 0 : index
    %c0_0 = arith.constant 0 : index
    %1 = vector.load %arg1[%c0, %c0_0] : memref<8x8xi32, #tpu.memory_space<vmem>>, vector<8x8xi32>
    %2 = vector.shape_cast %1 : vector<8x8xi32> to vector<8x8x1xi32>
    %3 = vector.broadcast %2 : vector<8x8x1xi32> to vector<8x8x128xi32>
    %4 = arith.cmpi eq, %0, %3 : vector<8x8x128xi32>
    %5 = arith.extui %4 : vector<8x8x128xi1> to vector<8x8x128xi32>
    %6 = arith.sitofp %5 : vector<8x8x128xi32> to vector<8x8x128xf32>
    %cst = arith.constant dense<0.000000e+00> : vector<8x128xf32>
    %7 = vector.multi_reduction <add>, %6, %cst [1] : vector<8x8x128xf32> to vector<8x128xf32>
    %8 = arith.truncf %7 : vector<8x128xf32> to vector<8x128xbf16>
    %c0_1 = arith.constant 0 : index
    %c0_2 = arith.constant 0 : index
    %9 = vector.load %arg2[%c0_1, %c0_2] : memref<128x128xbf16, #tpu.memory_space<vmem>>, vector<128x128xbf16>
    %cst_3 = arith.constant dense<0.000000e+00> : vector<8x128xf32>
    %10 = tpu.matmul %8, %9, %cst_3 {dimension_numbers = #tpu.dot_dimension_numbers<[1], [0], [0], [1], [0, 0, 1, 1], [], []>} : vector<8x128xbf16>, vector<128x128xbf16>, vector<8x128xf32> -> vector<8x128xf32>
    %cst_4 = arith.constant 1.250000e-01 : f32
    %11 = vector.broadcast %cst_4 : f32 to vector<8x128xf32>
    %12 = arith.mulf %10, %11 : vector<8x128xf32>
    %c0_5 = arith.constant 0 : index
    %c0_6 = arith.constant 0 : index
    %13 = vector.load %arg3[%c0_5, %c0_6] : memref<1x128xf32, #tpu.memory_space<vmem>>, vector<1x128xf32>
    %14 = vector.broadcast %13 : vector<1x128xf32> to vector<8x128xf32>
    %15 = arith.mulf %12, %14 : vector<8x128xf32>
    %cst_7 = arith.constant dense<0.000000e+00> : vector<8xf32>
    %16 = vector.multi_reduction <add>, %15, %cst_7 [1] : vector<8x128xf32> to vector<8xf32>
    %17 = vector.shape_cast %16 : vector<8xf32> to vector<8x1xf32>
    %c0_8 = arith.constant 0 : index
    %c0_9 = arith.constant 0 : index
    %18 = memref.load %arg4[%c0_8, %c0_9] : memref<1x1xf32, #tpu.memory_space<smem>>
    %19 = vector.broadcast %18 : f32 to vector<8x1xf32>
    %20 = arith.addf %17, %19 : vector<8x1xf32>
    %21 = arith.negf %20 : vector<8x1xf32>
    %22 = math.exp %21 : vector<8x1xf32>
    %cst_10 = arith.constant 1.000000e+00 : f32
    %23 = vector.broadcast %cst_10 : f32 to vector<8x1xf32>
    %24 = arith.addf %23, %22 : vector<8x1xf32>
    %25 = arith.divf %23, %24 : vector<8x1xf32>
    %26 = vector.shape_cast %25 : vector<8x1xf32> to vector<8x1xf32>
    %27 = vector.broadcast %26 : vector<8x1xf32> to vector<8x128xf32>
    %c0_11 = arith.constant 0 : index
    %c0_12 = arith.constant 0 : index
    %28 = vector.load %arg5[%c0_11, %c0_12] : memref<8x128xf32, #tpu.memory_space<vmem>>, vector<8x128xf32>
    tpu.vector_store %arg5[%c0_11, %c0_12], %27 {strides = array<i32>} : memref<8x128xf32, #tpu.memory_space<vmem>>, vector<8x128xf32>,
    return
  }
  func.func @transform_0(%arg0: i32) -> (i32, i32) {
    %c0_i32 = arith.constant 0 : i32
    %c0_i32_0 = arith.constant 0 : i32
    return %arg0, %c0_i32 : i32, i32
  }
  func.func @transform_1(%arg0: i32) -> (i32, i32) {
    %c0_i32 = arith.constant 0 : i32
    %c0_i32_0 = arith.constant 0 : i32
    %c0_i32_1 = arith.constant 0 : i32
    return %c0_i32, %c0_i32_0 : i32, i32
  }
  func.func @transform_2(%arg0: i32) -> (i32, i32) {
    %c0_i32 = arith.constant 0 : i32
    %c0_i32_0 = arith.constant 0 : i32
    %c0_i32_1 = arith.constant 0 : i32
    return %c0_i32, %c0_i32_0 : i32, i32
  }
  func.func @transform_3(%arg0: i32) -> (i32, i32) {
    %c0_i32 = arith.constant 0 : i32
    %c0_i32_0 = arith.constant 0 : i32
    %c0_i32_1 = arith.constant 0 : i32
    return %c0_i32, %c0_i32_0 : i32, i32
  }
  func.func @transform_4(%arg0: i32) -> (i32, i32) {
    %c0_i32 = arith.constant 0 : i32
    %c0_i32_0 = arith.constant 0 : i32
    return %arg0, %c0_i32 : i32, i32
  }
}

</mosaic_0001>

<llo_original>
// kernel: tpu_custom_call.1
$region0: #{tpu_custom_call.1}
  #allocation0 [shape = 'u32[]', space=smem, size = 0x4, offset = 0x4, fixed_abs, tag = 'smem constant byte address 0x4 - core index']
  #allocation1 [shape = 'u32[72,128]{1,0:T(1,128)}', space=vmem, size = 0x9000, scoped, tag = 'internal scratch']
  #allocation2 [shape = 'f32[1,1]{1,0:T(1,128)S(6)}', space=smem, size = 0x200, scoped, tag = 'scoped memory for tpu_custom_call.1']
  %s0 = inlined_call_operand.hbm [shape: s32[8,8], index: 0, kind: input, shape index: {}]
  %s1 = inlined_call_operand.hbm [shape: bf16[128,128], index: 1, kind: input, shape index: {}]
  %s2 = inlined_call_operand.vmem [shape: f32[1,128], index: 2, kind: input, shape index: {}]
  %s3 = inlined_call_operand.<no memory space> [shape: f32[1,1], index: 3, kind: input, shape index: {}]
  %s4 = inlined_call_operand.hbm [shape: f32[8,128], index: 4, kind: output, shape index: {}]
  %s5 = sld [smem:[#allocation0]]
  $region34: #{tpu_custom_call.1} parent=0
    _
  %s7 = ssub.s32 1, %s5
  %s8 = scalar_select 0, %s7, %s5
  %9 = sst [smem:[#allocation2]] %s3
  $region1: #{tpu_custom_call.1} parent=0
    #allocation3 [shape = 'u8[4096]{0}', space=vmem, size = 0x1000, scoped, tag = 'input window, operand 0, single buffered']
    #allocation4 [shape = 's32[1]{0}', space=sflag, size = 0x4, scoped, tag = 'scoped memory for tpu_custom_call.1']
    #allocation5 [shape = 's32[1]{0}', space=sflag, size = 0x4, scoped, tag = 'scoped memory for tpu_custom_call.1']
    #allocation6 [shape = 'u8[32768]{0}', space=vmem, size = 0x8000, scoped, tag = 'input window, operand 1, single buffered']
    #allocation7 [shape = 's32[1]{0}', space=sflag, size = 0x4, scoped, tag = 'scoped memory for tpu_custom_call.1']
    #allocation8 [shape = 'u8[4096]{0}', space=vmem, size = 0x1000, scoped, tag = 'output window, operand 0, single buffered']
    %10 = vsyncpa [#allocation4], 0
    %11 = vsyncpa [#allocation7], 0
    %12 = vsyncpa [#allocation5], 0
    // Predicated region
    $region2: #{tpu_custom_call.1} parent=1 // pred_check
      _
    $region3: #{tpu_custom_call.1} parent=1 // pred_check_branch
      %14 = sbr.rel (0) target = $region5
    $region4: #{tpu_custom_call.1} parent=1 // pred_region
      %16 = vsyncadd [#allocation4], 0
      %s18 = sshll.u32 %s0, 4
      %s19 = int_to_ptr.hbm [resolvable:$true] %s18
      %s20 = sshll.u32 [#allocation3], 4
      %s21 = int_to_ptr.vmem [resolvable:$true] %s20
      %23 = dma.hbm_to_vmem [thread:$0]  %s19, 128, %s21, [#allocation4]
    $region5: #{tpu_custom_call.1} parent=1 // pred_fallthru
      _
    // Predicated region
    $region6: #{tpu_custom_call.1} parent=1 // pred_check
      _
    $region7: #{tpu_custom_call.1} parent=1 // pred_check_branch
      %25 = sbr.rel (0) target = $region9
    $region8: #{tpu_custom_call.1} parent=1 // pred_region
      %27 = vsyncadd [#allocation7], 0
      %s28 = sshll.u32 %s1, 4
      %s29 = int_to_ptr.hbm [resolvable:$true] %s28
      %s30 = sshll.u32 [#allocation6], 4
      %s31 = int_to_ptr.vmem [resolvable:$true] %s30
      %36 = dma.hbm_to_vmem [thread:$0]  %s29, 1024, %s31, [#allocation7], 64, 64, 4
    $region9: #{tpu_custom_call.1} parent=1 // pred_fallthru
      _
    // Predicated region
    $region10: #{tpu_custom_call.1} parent=1 // pred_check
      _
    $region11: #{tpu_custom_call.1} parent=1 // pred_check_branch
      %38 = sbr.rel (0) target = $region13
    $region12: #{tpu_custom_call.1} parent=1 // pred_region
      _
    $region13: #{tpu_custom_call.1} parent=1 // pred_fallthru
      _
    // Predicated region
    $region14: #{tpu_custom_call.1} parent=1 // pred_check
      _
    $region15: #{tpu_custom_call.1} parent=1 // pred_check_branch
      %40 = sbr.rel (0) target = $region17
    $region16: #{tpu_custom_call.1} parent=1 // pred_region
      _
    $region17: #{tpu_custom_call.1} parent=1 // pred_fallthru
      _
    // Predicated region
    $region18: #{tpu_custom_call.1} parent=1 // pred_check
      _
    $region19: #{tpu_custom_call.1} parent=1 // pred_check_branch
      %42 = sbr.rel (0) target = $region21
    $region20: #{tpu_custom_call.1} parent=1 // pred_region
      %44 = dma.done [#allocation4], 128
    $region21: #{tpu_custom_call.1} parent=1 // pred_fallthru
      _
    // Predicated region
    $region22: #{tpu_custom_call.1} parent=1 // pred_check
      _
    $region23: #{tpu_custom_call.1} parent=1 // pred_check_branch
      %46 = sbr.rel (0) target = $region25
    $region24: #{tpu_custom_call.1} parent=1 // pred_region
      %48 = dma.done [#allocation7], 1024
    $region25: #{tpu_custom_call.1} parent=1 // pred_fallthru
      _
    %v49 = vlaneseq
    %v50 = vand.u32 %v49, 127
    %v51 = vld [vmem:[#allocation3] sm:$0xff]
    %v52 = vperm.slane %v51, 0
    %v53 = vlaneseq
    %v54 = vshrl.u32 %v53, 7
    %56 = vset.pattern.permute.xlu0 %v54
    %57 = vperm.xlu0 %56, %v52
    %v58 = vpop.permute.xlu0 %57
    %v59 = vperm.slane %v51, 1
    %v60 = vlaneseq
    %v61 = vshrl.u32 %v60, 7
    %63 = vset.pattern.permute.xlu0 %v61
    %64 = vperm.xlu0 %63, %v59
    %v65 = vpop.permute.xlu0 %64
    %v66 = vperm.slane %v51, 2
    %v67 = vlaneseq
    %v68 = vshrl.u32 %v67, 7
    %70 = vset.pattern.permute.xlu0 %v68
    %71 = vperm.xlu0 %70, %v66
    %v72 = vpop.permute.xlu0 %71
    %v73 = vperm.slane %v51, 3
    %v74 = vlaneseq
    %v75 = vshrl.u32 %v74, 7
    %77 = vset.pattern.permute.xlu0 %v75
    %78 = vperm.xlu0 %77, %v73
    %v79 = vpop.permute.xlu0 %78
    %v80 = vperm.slane %v51, 4
    %v81 = vlaneseq
    %v82 = vshrl.u32 %v81, 7
    %84 = vset.pattern.permute.xlu0 %v82
    %85 = vperm.xlu0 %84, %v80
    %v86 = vpop.permute.xlu0 %85
    %v87 = vperm.slane %v51, 5
    %v88 = vlaneseq
    %v89 = vshrl.u32 %v88, 7
    %91 = vset.pattern.permute.xlu0 %v89
    %92 = vperm.xlu0 %91, %v87
    %v93 = vpop.permute.xlu0 %92
    %v94 = vperm.slane %v51, 6
    %v95 = vlaneseq
    %v96 = vshrl.u32 %v95, 7
    %98 = vset.pattern.permute.xlu0 %v96
    %99 = vperm.xlu0 %98, %v94
    %v100 = vpop.permute.xlu0 %99
    %v101 = vperm.slane %v51, 7
    %v102 = vlaneseq
    %v103 = vshrl.u32 %v102, 7
    %105 = vset.pattern.permute.xlu0 %v103
    %106 = vperm.xlu0 %105, %v101
    %v107 = vpop.permute.xlu0 %106
    %vm108 = vcmp.eq.s32.totalorder %v50, %v58
    %vm109 = vcmp.eq.s32.totalorder %v50, %v65
    %vm110 = vcmp.eq.s32.totalorder %v50, %v72
    %vm111 = vcmp.eq.s32.totalorder %v50, %v79
    %vm112 = vcmp.eq.s32.totalorder %v50, %v86
    %vm113 = vcmp.eq.s32.totalorder %v50, %v93
    %vm114 = vcmp.eq.s32.totalorder %v50, %v100
    %vm115 = vcmp.eq.s32.totalorder %v50, %v107
    %v116 = vsel %vm108, 1, 0
    %v117 = vsel %vm109, 1, 0
    %v118 = vsel %vm110, 1, 0
    %v119 = vsel %vm111, 1, 0
    %v120 = vsel %vm112, 1, 0
    %v121 = vsel %vm113, 1, 0
    %v122 = vsel %vm114, 1, 0
    %v123 = vsel %vm115, 1, 0
    %v124 = vcvt.s32.f32 %v116
    %v125 = vcvt.s32.f32 %v117
    %v126 = vcvt.s32.f32 %v118
    %v127 = vcvt.s32.f32 %v119
    %v128 = vcvt.s32.f32 %v120
    %v129 = vcvt.s32.f32 %v121
    %v130 = vcvt.s32.f32 %v122
    %v131 = vcvt.s32.f32 %v123
    %v132 = vrot.slane %v124, 4
    %v133 = vadd.f32 %v124, %v132
    %v134 = vrot.slane %v133, 2
    %v135 = vadd.f32 %v133, %v134
    %v136 = vrot.slane %v135, 1
    %v137 = vadd.f32 %v135, %v136
    %v138 = vrot.slane %v125, 4
    %v139 = vadd.f32 %v125, %v138
    %v140 = vrot.slane %v139, 2
    %v141 = vadd.f32 %v139, %v140
    %v142 = vrot.slane %v141, 1
    %v143 = vadd.f32 %v141, %v142
    %v144 = vrot.slane %v126, 4
    %v145 = vadd.f32 %v126, %v144
    %v146 = vrot.slane %v145, 2
    %v147 = vadd.f32 %v145, %v146
    %v148 = vrot.slane %v147, 1
    %v149 = vadd.f32 %v147, %v148
    %v150 = vrot.slane %v127, 4
    %v151 = vadd.f32 %v127, %v150
    %v152 = vrot.slane %v151, 2
    %v153 = vadd.f32 %v151, %v152
    %v154 = vrot.slane %v153, 1
    %v155 = vadd.f32 %v153, %v154
    %v156 = vrot.slane %v128, 4
    %v157 = vadd.f32 %v128, %v156
    %v158 = vrot.slane %v157, 2
    %v159 = vadd.f32 %v157, %v158
    %v160 = vrot.slane %v159, 1
    %v161 = vadd.f32 %v159, %v160
    %v162 = vrot.slane %v129, 4
    %v163 = vadd.f32 %v129, %v162
    %v164 = vrot.slane %v163, 2
    %v165 = vadd.f32 %v163, %v164
    %v166 = vrot.slane %v165, 1
    %v167 = vadd.f32 %v165, %v166
    %v168 = vrot.slane %v130, 4
    %v169 = vadd.f32 %v130, %v168
    %v170 = vrot.slane %v169, 2
    %v171 = vadd.f32 %v169, %v170
    %v172 = vrot.slane %v171, 1
    %v173 = vadd.f32 %v171, %v172
    %v174 = vrot.slane %v131, 4
    %v175 = vadd.f32 %v131, %v174
    %v176 = vrot.slane %v175, 2
    %v177 = vadd.f32 %v175, %v176
    %v178 = vrot.slane %v177, 1
    %v179 = vadd.f32 %v177, %v178
    %v180 = vpack.c.bf16 %v137, %v137
    %v181 = vpack.c.bf16 %v143, %v143
    %v182 = vpack.c.bf16 %v149, %v149
    %v183 = vpack.c.bf16 %v155, %v155
    %v184 = vpack.c.bf16 %v161, %v161
    %v185 = vpack.c.bf16 %v167, %v167
    %v186 = vpack.c.bf16 %v173, %v173
    %v187 = vpack.c.bf16 %v179, %v179
    %v188 = vld [vmem:[#allocation6] sm:$0xf]
    %v189 = vld [vmem:[#allocation6 + $0x4] sm:$0xf]
    %v190 = vld [vmem:[#allocation6 + $0x8] sm:$0xf]
    %v191 = vld [vmem:[#allocation6 + $0xc] sm:$0xf]
    %v192 = vld [vmem:[#allocation6 + $0x10] sm:$0xf]
    %v193 = vld [vmem:[#allocation6 + $0x14] sm:$0xf]
    %v194 = vld [vmem:[#allocation6 + $0x18] sm:$0xf]
    %v195 = vld [vmem:[#allocation6 + $0x1c] sm:$0xf]
    %v196 = vld [vmem:[#allocation6 + $0x20] sm:$0xf]
    %v197 = vld [vmem:[#allocation6 + $0x24] sm:$0xf]
    %v198 = vld [vmem:[#allocation6 + $0x28] sm:$0xf]
    %v199 = vld [vmem:[#allocation6 + $0x2c] sm:$0xf]
    %v200 = vld [vmem:[#allocation6 + $0x30] sm:$0xf]
    %v201 = vld [vmem:[#allocation6 + $0x34] sm:$0xf]
    %v202 = vld [vmem:[#allocation6 + $0x38] sm:$0xf]
    %v203 = vld [vmem:[#allocation6 + $0x3c] sm:$0xf]
    %v212 = vunpack.c.l.b16 %v180
    %v213 = vunpack.c.l.b16 %v181
    %v214 = vunpack.c.l.b16 %v182
    %v215 = vunpack.c.l.b16 %v183
    %v216 = vunpack.c.l.b16 %v184
    %v217 = vunpack.c.l.b16 %v185
    %v218 = vunpack.c.l.b16 %v186
    %v219 = vunpack.c.l.b16 %v187
    %vm220 = vcmask 1041409
    %v221 = vsel %vm220, %v213, %v212
    %vm222 = vcmask 1042434
    %v223 = vsel %vm222, %v214, %v221
    %vm224 = vcmask 1043459
    %v225 = vsel %vm224, %v215, %v223
    %vm226 = vcmask 1044484
    %v227 = vsel %vm226, %v216, %v225
    %vm228 = vcmask 1045509
    %v229 = vsel %vm228, %v217, %v227
    %vm230 = vcmask 1046534
    %v231 = vsel %vm230, %v218, %v229
    %vm232 = vcmask 1047559
    %v233 = vsel %vm232, %v219, %v231
    %v234 = vpack.c.b16 %v233, %v233
    %v252 = vunpack.c.l.b16 %v188
    %v253 = vunpack.c.l.b16 %v189
    %v254 = vunpack.c.l.b16 %v190
    %v255 = vunpack.c.l.b16 %v191
    %v256 = vunpack.c.l.b16 %v192
    %v257 = vunpack.c.l.b16 %v193
    %v258 = vunpack.c.l.b16 %v194
    %v259 = vunpack.c.l.b16 %v195
    %v260 = vunpack.c.l.b16 %v196
    %v261 = vunpack.c.l.b16 %v197
    %v262 = vunpack.c.l.b16 %v198
    %v263 = vunpack.c.l.b16 %v199
    %v264 = vunpack.c.l.b16 %v200
    %v265 = vunpack.c.l.b16 %v201
    %v266 = vunpack.c.l.b16 %v202
    %v267 = vunpack.c.l.b16 %v203
    %v268 = vpack.c.b16 %v253, %v252
    %v269 = vpack.c.b16 %v255, %v254
    %v270 = vpack.c.b16 %v257, %v256
    %v271 = vpack.c.b16 %v259, %v258
    %v272 = vpack.c.b16 %v261, %v260
    %v273 = vpack.c.b16 %v263, %v262
    %v274 = vpack.c.b16 %v265, %v264
    %v275 = vpack.c.b16 %v267, %v266
    %284 = vmatpush.bf16.msra.mxu0 %v275
    %285 = vmatpush.bf16.msra.mxu0 %v274
    %286 = vmatpush.bf16.msra.mxu0 %v273
    %287 = vmatpush.bf16.msra.mxu0 %v272
    %288 = vmatpush.bf16.msra.mxu0 %v271
    %289 = vmatpush.bf16.msra.mxu0 %v270
    %290 = vmatpush.bf16.msra.mxu0 %v269
    %291 = vmatpush.bf16.msra.mxu0 %v268
    %292 = vmatmul.bf16.gmra.mxu0 %v234
    %v293 = vpop.f32.mrf.mxu0
    %v294 = vadd.f32 0.0, %v293
    %v295 = vpop.f32.mrf.mxu0
    %296 = vdwg.mxu0
    %v297 = vmul.f32 %v294, 0.125
    %v298 = vld [vmem:[%s2] sm:$0x1]
    %v300 = vperm.slane %v298, 0
    %v302 = vmul.f32 %v297, %v300
    %303 = vadd.xlane.f32.xlu0 %v302
    %v304 = vpop.xlane.xlu0 %303
    %s305 = sld [smem:[#allocation2]]
    %v306 = vstv %s305
    %v307 = vadd.f32 %v304, %v306
    %v308 = vxor.u32 %v307, 2147483648
    %v309 = vmul.f32 %v308, 1.442695
    %v310 = vpow.pop %v309
    %v311 = vadd.f32 %v310, 1.0
    %v312 = vrcp.pop %v311
    %v313 = vmul.f32 %v311, %v312
    %v314 = vsub.f32 1.0, %v313
    %v315 = vmul.f32 %v312, %v314
    %v316 = vadd.f32 %v312, %v315
    %vm317 = vweird.f32 %v311
    %vm318 = vweird.f32 %v312
    %vm319 = vmor %vm317, %vm318
    %v320 = vsel %vm319, %v312, %v316
    %v321 = vand.u32 2147483647, %v311
    %vm322 = vcmp.eq.f32.partialorder %v321, 8.507059e+37
    %v323 = vand.u32 %v311, 2147483648
    %v324 = vor.u32 1.1754944e-38, %v323
    %v325 = vsel %vm322, %v324, %v320
    %v326 = vmul.f32 1.0, %v325
    %327 = vst [vmem:[#allocation8] sm:$0xff] %v326
    // Predicated region
    $region26: #{tpu_custom_call.1} parent=1 // pred_check
      _
    $region27: #{tpu_custom_call.1} parent=1 // pred_check_branch
      %329 = sbr.rel (0) target = $region29
    $region28: #{tpu_custom_call.1} parent=1 // pred_region
      %331 = vsyncadd [#allocation5], 0
      %s333 = sshll.u32 [#allocation8], 4
      %s334 = int_to_ptr.vmem [resolvable:$true] %s333
      %s335 = sshll.u32 %s4, 4
      %s336 = int_to_ptr.hbm [resolvable:$true] %s335
      %338 = dma.vmem_to_hbm [thread:$0]  %s334, 128, %s336, [#allocation5]
    $region29: #{tpu_custom_call.1} parent=1 // pred_fallthru
      _
    // Predicated region
    $region30: #{tpu_custom_call.1} parent=1 // pred_check
      _
    $region31: #{tpu_custom_call.1} parent=1 // pred_check_branch
      %340 = sbr.rel (0) target = $region33
    $region32: #{tpu_custom_call.1} parent=1 // pred_region
      %342 = dma.done [#allocation5], 128
    $region33: #{tpu_custom_call.1} parent=1 // pred_fallthru
      _
    %343 = vsyncpa [#allocation4], 1
    %344 = vsyncpa [#allocation7], 1
    %345 = vsyncpa [#allocation5], 1

</llo_original>
